<compile_context>
chip_gen: v5e
topology: v5e:2x2
jax: 0.10.0
libtpu: 0.0.40
codegen_flags: <defaults>
</compile_context>

<pallas_src>
import math
from functools import partial

import jax
import jax.numpy as jnp
import numpy as np
from jax.experimental import pallas as pl
from jax.experimental.pallas import tpu as pltpu

LANES = 128


def _round_up(x, m):
    return ((x + m - 1) // m) * m


def _vmem_limit(block_bytes):
    return int(min(max(2 * block_bytes + (8 << 20), 16 << 20), 48 << 20))


def _snake(x, alpha_row):
    """x + sin(a*x)^2 / (a + 1e-9), with the divide hoisted to one (1, C) reciprocal."""
    inv_a = pl.reciprocal(alpha_row + 1e-9, approx=True)
    s = jnp.sin(alpha_row * x)
    return x + s * s * inv_a


# --------------------------------------------------------------------------
# Kernel 1: Snake1d + polyphase WNConvTranspose1d (phase-major-in-lanes output)
# --------------------------------------------------------------------------
def _tconv_kernel(x_ref, a0_ref, wt_ref, bt_ref, o_ref):
    # x_ref : (L+2, Cin_p) original input (snake applied here), one zero row per side
    # wt_ref: (2*Cin_p, S*Cout_p) bf16 polyphase weights   [block0 -> x[q], block1 -> x[q-1]]
    # bt_ref: (1, S*Cout_p)
    # o_ref : (L+1, S*Cout_p)  row q, lane-block r  ==  output position q*S + r - pad
    lp1 = o_ref.shape[0]
    h = _snake(x_ref[...], a0_ref[...])
    a = jnp.concatenate([h[1:lp1 + 1, :], h[0:lp1, :]], axis=1).astype(jnp.bfloat16)
    p = jnp.dot(a, wt_ref[...], preferred_element_type=jnp.float32)
    o_ref[...] = p + bt_ref[...]


# --------------------------------------------------------------------------
# Kernel 2: three ResidualUnits (dilations 1, 3, 9), L-tiled with halo.
# Valid (shrinking-window) convs over the halo'd tile; rows outside the true
# sequence are re-zeroed between units so the zero-padded conv semantics match.
# --------------------------------------------------------------------------
def _resunits_kernel(y_ref, ra1_ref, rw1_ref, rb1_ref, ra2_ref, rw2_ref, rb2_ref,
                     o_ref, *, tile_l, halo, l_out):
    l = pl.program_id(1)
    y = y_ref[...]                                   # (tile_l + 2*halo, Cout_p) f32
    off = 0
    for u, dil in enumerate((1, 3, 9)):
        w = y.shape[0]
        s1 = _snake(y, ra1_ref[u:u + 1, :])
        wc = w - 6 * dil
        im2col = jnp.concatenate([s1[k * dil:k * dil + wc, :] for k in range(7)],
                                 axis=1).astype(jnp.bfloat16)      # (wc, 7*Cout_p)
        c1 = jnp.dot(im2col, rw1_ref[u], preferred_element_type=jnp.float32)
        c1 = c1 + rb1_ref[u:u + 1, :]
        s2 = _snake(c1, ra2_ref[u:u + 1, :])
        c2 = jnp.dot(s2.astype(jnp.bfloat16), rw2_ref[u],
                     preferred_element_type=jnp.float32)
        c2 = c2 + rb2_ref[u:u + 1, :]
        y = y[3 * dil:w - 3 * dil, :] + c2
        off += 3 * dil
        if u < 2:
            # zero rows lying outside [0, l_out) so the next dilated conv sees the
            # same zero padding the PyTorch module does at the sequence boundary.
            g = (l * tile_l - halo + off
                 + jax.lax.broadcasted_iota(jnp.int32, (y.shape[0], 1), 0))
            valid = jnp.logical_and(g >= 0, g < l_out)
            y = y * valid.astype(y.dtype)
    o_ref[...] = y[halo - off:halo - off + tile_l, :]


# --------------------------------------------------------------------------
# Wrapper: layout glue (transpose / channel padding / halo tiling) + pallas_calls
# --------------------------------------------------------------------------
def decoder_block_pallas(x_ncl, tp, stride, *, tile_l=256):
    """x_ncl: (B, Cin, L) float32 (PyTorch NCL). tp: PyTorch-layout params."""
    B, Cin, L = x_ncl.shape
    s = int(stride)
    Kt = 2 * s
    p = math.ceil(s / 2)
    L_out = (L - 1) * s + Kt - 2 * p
    Cout = tp["bT"].shape[0]
    Cin_p = max(LANES, _round_up(Cin, LANES))
    Cp = max(LANES, _round_up(Cout, LANES))
    f32, bf16 = jnp.float32, jnp.bfloat16

    # ---- parameters -> kernel layout (channel padding, polyphase / im2col packing) ----
    a0 = jnp.ones((1, Cin_p), f32).at[0, :Cin].set(tp["alpha0"])
    w_lo = jnp.transpose(tp["wT"][:, :, :s], (0, 2, 1))     # (Cin, s, Cout): taps r   (x[q])
    w_hi = jnp.transpose(tp["wT"][:, :, s:], (0, 2, 1))     # (Cin, s, Cout): taps r+s (x[q-1])
    wt = jnp.zeros((2, Cin_p, s, Cp), f32)
    wt = wt.at[0, :Cin, :, :Cout].set(w_lo).at[1, :Cin, :, :Cout].set(w_hi)
    wt = wt.reshape(2 * Cin_p, s * Cp).astype(bf16)
    bt = jnp.zeros((Cp,), f32).at[:Cout].set(tp["bT"])
    bt = jnp.tile(bt, (s,))[None, :]                        # (1, s*Cp)

    ra1 = jnp.ones((3, Cp), f32).at[:, :Cout].set(tp["a1"])
    rb1 = jnp.zeros((3, Cp), f32).at[:, :Cout].set(tp["b1"])
    ra2 = jnp.ones((3, Cp), f32).at[:, :Cout].set(tp["a2"])
    rb2 = jnp.zeros((3, Cp), f32).at[:, :Cout].set(tp["b2"])
    rw1 = jnp.zeros((3, 7, Cp, Cp), f32)
    rw1 = rw1.at[:, :, :Cout, :Cout].set(jnp.transpose(tp["w1"], (0, 3, 2, 1)))
    rw1 = rw1.reshape(3, 7 * Cp, Cp).astype(bf16)           # (unit, k*Cp + cin, cout)
    rw2 = jnp.zeros((3, Cp, Cp), f32)
    rw2 = rw2.at[:, :Cout, :Cout].set(jnp.transpose(tp["w2"][..., 0], (0, 2, 1)))
    rw2 = rw2.astype(bf16)

    # ---- input glue: NCL -> NLC, pad channels to 128 lanes, one zero row per side ----
    x_nlc = jnp.transpose(x_ncl, (0, 2, 1)).astype(f32)
    xpad = jnp.zeros((B, L + 2, Cin_p), f32).at[:, 1:L + 1, :Cin].set(x_nlc)

    # ---- kernel 1: Snake + polyphase transposed conv ----
    k1_cost = pl.CostEstimate(
        flops=int(2 * B * (L + 1) * (2 * Cin_p) * (s * Cp)),
        transcendentals=int(B * (L + 2) * Cin_p),
        bytes_accessed=int(xpad.size * 4 + wt.size * 2 + B * (L + 1) * s * Cp * 4))
    k1_vmem = _vmem_limit((L + 2) * Cin_p * 4 + Cin_p * 4 + 2 * Cin_p * s * Cp * 2
                          + s * Cp * 4 + (L + 1) * s * Cp * 4)
    phases = pl.pallas_call(
        _tconv_kernel,
        out_shape=jax.ShapeDtypeStruct((B, L + 1, s * Cp), f32),
        grid=(B,),
        in_specs=[
            pl.BlockSpec((None, L + 2, Cin_p), lambda b: (b, 0, 0)),
            pl.BlockSpec((1, Cin_p), lambda b: (0, 0)),
            pl.BlockSpec((2 * Cin_p, s * Cp), lambda b: (0, 0)),
            pl.BlockSpec((1, s * Cp), lambda b: (0, 0)),
        ],
        out_specs=pl.BlockSpec((None, L + 1, s * Cp), lambda b: (b, 0, 0)),
        compiler_params=pltpu.CompilerParams(
            dimension_semantics=("parallel",), vmem_limit_bytes=k1_vmem),
        cost_estimate=k1_cost,
    )(xpad, a0, wt, bt)

    # Free XLA reshape: phase r of step q lands at row q*s + r = output_index + p.
    y = phases.reshape(B, (L + 1) * s, Cp)[:, p:p + L_out, :]

    # ---- kernel 2: residual-unit chain, L-tiled with halo ----
    H = 40                                                  # >= 3 + 9 + 27, multiple of 8
    TL = min(_round_up(max(int(tile_l), 8), 8), _round_up(L_out, 8))
    NL = (L_out + TL - 1) // TL
    Lpad = NL * TL
    W0 = TL + 2 * H
    ypad = jnp.zeros((B, Lpad + 2 * H, Cp), f32).at[:, H:H + L_out, :].set(y)
    y_tiles = jnp.stack([ypad[:, i * TL:i * TL + W0, :] for i in range(NL)],
                        axis=1).reshape(B * NL, W0, Cp)

    k2 = partial(_resunits_kernel, tile_l=TL, halo=H, l_out=L_out)
    k2_cost = pl.CostEstimate(
        flops=int(2 * B * NL * 3 * W0 * (7 + 1) * Cp * Cp),
        transcendentals=int(2 * B * NL * 3 * W0 * Cp),
        bytes_accessed=int(y_tiles.size * 4 + (rw1.size + rw2.size) * 2
                           + B * Lpad * Cp * 4))
    k2_vmem = _vmem_limit(W0 * Cp * 4 + TL * Cp * 4 + 4 * 3 * Cp * 4
                          + (3 * 7 * Cp * Cp + 3 * Cp * Cp) * 2)
    out_p = pl.pallas_call(
        k2,
        out_shape=jax.ShapeDtypeStruct((B, Lpad, Cp), f32),
        grid=(B, NL),
        in_specs=[
            pl.BlockSpec((None, W0, Cp), lambda b, l: (b * NL + l, 0, 0)),
            pl.BlockSpec((3, Cp), lambda b, l: (0, 0)),
            pl.BlockSpec((3, 7 * Cp, Cp), lambda b, l: (0, 0, 0)),
            pl.BlockSpec((3, Cp), lambda b, l: (0, 0)),
            pl.BlockSpec((3, Cp), lambda b, l: (0, 0)),
            pl.BlockSpec((3, Cp, Cp), lambda b, l: (0, 0, 0)),
            pl.BlockSpec((3, Cp), lambda b, l: (0, 0)),
        ],
        out_specs=pl.BlockSpec((None, TL, Cp), lambda b, l: (b, l, 0)),
        compiler_params=pltpu.CompilerParams(
            dimension_semantics=("parallel", "parallel"), vmem_limit_bytes=k2_vmem),
        cost_estimate=k2_cost,
    )(y_tiles, ra1, rw1, rb1, ra2, rw2, rb2)

    # back to PyTorch NCL layout, dropping channel / length padding
    return jnp.transpose(out_p[:, :L_out, :Cout], (0, 2, 1))


# --------------------------------------------------------------------------
# Deterministic parameter init (PyTorch layout; weight_norm already folded)
# --------------------------------------------------------------------------
def make_params(key, input_dim, output_dim, stride):
    Kt = 2 * stride
    ks = jax.random.split(key, 9)
    s = 0.1
    return dict(
        alpha0=1.0 + 0.1 * jax.random.normal(ks[0], (input_dim,)),
        wT=s * jax.random.normal(ks[1], (input_dim, output_dim, Kt)),    # ConvTranspose1d
        bT=s * jax.random.normal(ks[2], (output_dim,)),
        a1=1.0 + 0.1 * jax.random.normal(ks[3], (3, output_dim)),
        w1=s * jax.random.normal(ks[4], (3, output_dim, output_dim, 7)),  # dilated Conv1d
        b1=s * jax.random.normal(ks[5], (3, output_dim)),
        a2=1.0 + 0.1 * jax.random.normal(ks[6], (3, output_dim)),
        w2=s * jax.random.normal(ks[7], (3, output_dim, output_dim, 1)),  # 1x1 Conv1d
        b2=s * jax.random.normal(ks[8], (3, output_dim)),
    )


# --------------------------------------------------------------------------
# Pure-JAX reference (PyTorch semantics) for verification
# --------------------------------------------------------------------------
def decoder_block_reference(x_ncl, tp, stride):
    dn = ("NCH", "OIH", "NCH")
    Kt = 2 * stride
    p = math.ceil(stride / 2)
    hp = jax.lax.Precision.HIGHEST

    def snake(x, alpha):  # alpha: (C,)
        a = alpha[None, :, None]
        return x + jnp.sin(a * x) ** 2 / (a + 1e-9)

    def conv1d(x, w, b, dil, pad):
        y = jax.lax.conv_general_dilated(
            x, w, window_strides=(1,), padding=[(pad, pad)],
            rhs_dilation=(dil,), dimension_numbers=dn, precision=hp)
        return y + b[None, :, None]

    h = snake(x_ncl, tp["alpha0"])
    w_eq = jnp.flip(jnp.transpose(tp["wT"], (1, 0, 2)), axis=2)  # (Cout, Cin, Kt), flipped
    y = jax.lax.conv_general_dilated(
        h, w_eq, window_strides=(1,), padding=[(Kt - 1 - p, Kt - 1 - p)],
        lhs_dilation=(stride,), dimension_numbers=dn, precision=hp)
    y = y + tp["bT"][None, :, None]

    for u, dil in enumerate((1, 3, 9)):
        s1 = snake(y, tp["a1"][u])
        c1 = conv1d(s1, tp["w1"][u], tp["b1"][u], dil, 3 * dil)
        s2 = snake(c1, tp["a2"][u])
        c2 = conv1d(s2, tp["w2"][u], tp["b2"][u], 1, 0)
        y = y + c2  # pad = (x.L - y.L)//2 == 0 -> no crop
    return y


if __name__ == "__main__":
    B, Cin, Cout, L, stride = 2, 16, 8, 16, 2  # DecoderBlock(16, 8, stride=2)

    key = jax.random.PRNGKey(0)
    kx, kp = jax.random.split(key)
    x = jax.random.normal(kx, (B, Cin, L), jnp.float32)
    tp = make_params(kp, Cin, Cout, stride)

    # tile_l=16 -> 2 length-tiles, exercising the halo / boundary-mask path.
    out = decoder_block_pallas(x, tp, stride, tile_l=16)
    out = jax.block_until_ready(out)

    L_out = (L - 1) * stride + 2 * stride - 2 * math.ceil(stride / 2)
    assert out.shape == (B, Cout, L_out), out.shape

    ref = decoder_block_reference(x, tp, stride)
    # bf16 MXU operands + approx reciprocal => ~1e-3..1e-2 relative differences.
    np.testing.assert_allclose(np.asarray(out), np.asarray(ref), rtol=1e-2, atol=2e-2)

    print("KERNEL_OK")
</pallas_src>

<mosaic_0001>
module attributes {stable_mosaic.version = 11 : i64} {
  func.func @_tconv_kernel(%arg0: i32, %arg1: memref<1x18x128xf32, #tpu.memory_space<vmem>>, %arg2: memref<1x128xf32, #tpu.memory_space<vmem>>, %arg3: memref<256x256xbf16, #tpu.memory_space<vmem>>, %arg4: memref<1x256xf32, #tpu.memory_space<vmem>>, %arg5: memref<1x17x256xf32, #tpu.memory_space<vmem>>) attributes {dimension_semantics = [#tpu.dimension_semantics<parallel>], iteration_bounds = array<i64: 2>, scalar_prefetch = 0 : i64, scratch_operands = 0 : i64, tpu.core_type = #tpu.core_type<tc>, window_params = [{transform_indices = @transform_0, window_bounds = array<i64: 1, 18, 128>}, {pipeline_mode = #tpu.pipeline_mode<synchronous>, transform_indices = @transform_1, window_bounds = array<i64: 1, 128>}, {pipeline_mode = #tpu.pipeline_mode<synchronous>, transform_indices = @transform_2, window_bounds = array<i64: 256, 256>}, {pipeline_mode = #tpu.pipeline_mode<synchronous>, transform_indices = @transform_3, window_bounds = array<i64: 1, 256>}, {transform_indices = @transform_4, window_bounds = array<i64: 1, 17, 256>}]} {
    %c0 = arith.constant 0 : index
    %c0_0 = arith.constant 0 : index
    %c0_1 = arith.constant 0 : index
    %0 = vector.load %arg1[%c0, %c0_0, %c0_1] : memref<1x18x128xf32, #tpu.memory_space<vmem>>, vector<1x18x128xf32>
    %1 = vector.shape_cast %0 : vector<1x18x128xf32> to vector<18x128xf32>
    %c0_2 = arith.constant 0 : index
    %c0_3 = arith.constant 0 : index
    %2 = vector.load %arg2[%c0_2, %c0_3] : memref<1x128xf32, #tpu.memory_space<vmem>>, vector<1x128xf32>
    %cst = arith.constant 9.99999971E-10 : f32
    %3 = vector.broadcast %cst : f32 to vector<1x128xf32>
    %4 = arith.addf %2, %3 : vector<1x128xf32>
    %5 = tpu.reciprocal %4 {approx = true} : vector<1x128xf32> -> vector<1x128xf32>
    %6 = vector.broadcast %2 : vector<1x128xf32> to vector<18x128xf32>
    %7 = arith.mulf %6, %1 : vector<18x128xf32>
    %8 = math.sin %7 : vector<18x128xf32>
    %9 = arith.mulf %8, %8 : vector<18x128xf32>
    %10 = vector.broadcast %5 : vector<1x128xf32> to vector<18x128xf32>
    %11 = arith.mulf %9, %10 : vector<18x128xf32>
    %12 = arith.addf %1, %11 : vector<18x128xf32>
    %13 = vector.extract_strided_slice %12 {offsets = [1, 0], sizes = [17, 128], strides = [1, 1]} : vector<18x128xf32> to vector<17x128xf32>
    %14 = vector.extract_strided_slice %12 {offsets = [0, 0], sizes = [17, 128], strides = [1, 1]} : vector<18x128xf32> to vector<17x128xf32>
    %15 = tpu.concatenate %13, %14 in 1 : vector<17x128xf32>, vector<17x128xf32> -> vector<17x256xf32>
    %16 = arith.truncf %15 : vector<17x256xf32> to vector<17x256xbf16>
    %c0_4 = arith.constant 0 : index
    %c0_5 = arith.constant 0 : index
    %17 = vector.load %arg3[%c0_4, %c0_5] : memref<256x256xbf16, #tpu.memory_space<vmem>>, vector<256x256xbf16>
    %cst_6 = arith.constant dense<0.000000e+00> : vector<17x256xf32>
    %18 = tpu.matmul %16, %17, %cst_6 {dimension_numbers = #tpu.dot_dimension_numbers<[1], [0], [0], [1], [0, 0, 1, 1], [], []>} : vector<17x256xbf16>, vector<256x256xbf16>, vector<17x256xf32> -> vector<17x256xf32>
    %c0_7 = arith.constant 0 : index
    %c0_8 = arith.constant 0 : index
    %19 = vector.load %arg4[%c0_7, %c0_8] : memref<1x256xf32, #tpu.memory_space<vmem>>, vector<1x256xf32>
    %20 = vector.broadcast %19 : vector<1x256xf32> to vector<17x256xf32>
    %21 = arith.addf %18, %20 : vector<17x256xf32>
    %c0_9 = arith.constant 0 : index
    %c0_10 = arith.constant 0 : index
    %c0_11 = arith.constant 0 : index
    %22 = vector.load %arg5[%c0_9, %c0_10, %c0_11] : memref<1x17x256xf32, #tpu.memory_space<vmem>>, vector<1x17x256xf32>
    %23 = vector.shape_cast %22 : vector<1x17x256xf32> to vector<17x256xf32>
    %24 = vector.shape_cast %21 : vector<17x256xf32> to vector<1x17x256xf32>
    tpu.vector_store %arg5[%c0_9, %c0_10, %c0_11], %24 {strides = array<i32>} : memref<1x17x256xf32, #tpu.memory_space<vmem>>, vector<1x17x256xf32>,
    return
  }
  func.func @transform_0(%arg0: i32) -> (i32, i32, i32) {
    %c0_i32 = arith.constant 0 : i32
    %c0_i32_0 = arith.constant 0 : i32
    %c0_i32_1 = arith.constant 0 : i32
    return %arg0, %c0_i32, %c0_i32_0 : i32, i32, i32
  }
  func.func @transform_1(%arg0: i32) -> (i32, i32) {
    %c0_i32 = arith.constant 0 : i32
    %c0_i32_0 = arith.constant 0 : i32
    %c0_i32_1 = arith.constant 0 : i32
    return %c0_i32, %c0_i32_0 : i32, i32
  }
  func.func @transform_2(%arg0: i32) -> (i32, i32) {
    %c0_i32 = arith.constant 0 : i32
    %c0_i32_0 = arith.constant 0 : i32
    %c0_i32_1 = arith.constant 0 : i32
    return %c0_i32, %c0_i32_0 : i32, i32
  }
  func.func @transform_3(%arg0: i32) -> (i32, i32) {
    %c0_i32 = arith.constant 0 : i32
    %c0_i32_0 = arith.constant 0 : i32
    %c0_i32_1 = arith.constant 0 : i32
    return %c0_i32, %c0_i32_0 : i32, i32
  }
  func.func @transform_4(%arg0: i32) -> (i32, i32, i32) {
    %c0_i32 = arith.constant 0 : i32
    %c0_i32_0 = arith.constant 0 : i32
    %c0_i32_1 = arith.constant 0 : i32
    return %arg0, %c0_i32, %c0_i32_0 : i32, i32, i32
  }
}

</mosaic_0001>

<llo_original>
// kernel: tpu_custom_call.1
$region0: #{tpu_custom_call.1}
  #allocation0 [shape = 'u32[]', space=smem, size = 0x4, offset = 0x4, fixed_abs, tag = 'smem constant byte address 0x4 - core index']
  #allocation1 [shape = 'u32[72,128]{1,0:T(1,128)}', space=vmem, size = 0x9000, scoped, tag = 'internal scratch']
  %s0 = inlined_call_operand.vmem [shape: f32[2,18,128], index: 0, kind: input, shape index: {}]
  %s1 = inlined_call_operand.vmem [shape: f32[1,128], index: 1, kind: input, shape index: {}]
  %s2 = inlined_call_operand.hbm [shape: bf16[256,256], index: 2, kind: input, shape index: {}]
  %s3 = inlined_call_operand.vmem [shape: f32[1,256], index: 3, kind: input, shape index: {}]
  %s4 = inlined_call_operand.vmem [shape: f32[2,17,256], index: 4, kind: output, shape index: {}]
  %s5 = sld [smem:[#allocation0]]
  $region53: #{tpu_custom_call.1} parent=0
    _
  %s7 = ssub.s32 1, %s5
  %s8 = scalar_select 0, %s7, %s5
  $region1: #{tpu_custom_call.1} parent=0
    #allocation2 [shape = 'u8[131072]{0}', space=vmem, size = 0x20000, scoped, tag = 'input window, operand 2, single buffered']
    #allocation3 [shape = 's32[2]{0}', space=sflag, size = 0x8, scoped, tag = 'scoped memory for tpu_custom_call.1']
    %9 = vsyncpa [#allocation3], 0
    loop: start=0, step=1, limit=4
    $region2: #{tpu_custom_call.1} parent=1 // loop_pre_header
      _
    $region3: #{tpu_custom_call.1} parent=1 // loop_header
      %s11 = sphi 0, %s15
      %p12 = scmp.ge.s32.totalorder %s11, 4
      %s21 = sphi 0, %s23
      %s24 = sphi 0, %s21
      %s25 = sphi 0, %s24
      %s41 = sphi 0, %s25
      %s45 = sphi 0, %s45
      %s47 = sphi 0, %s45
      %s48 = sphi 0, %s47
      %s62 = sphi 0, %s48
      %s66 = sphi 0, %s66
      %s68 = sphi 0, %s66
      %s69 = sphi 0, %s68
      %s83 = sphi 0, %s69
      %s87 = sphi 0, %s87
      %s89 = sphi 0, %s87
      %s90 = sphi 0, %s89
      %s104 = sphi 0, %s90
      %s110 = sphi 0, %s112
      %s113 = sphi 0, %s110
      %s114 = sphi 0, %s113
      %s130 = sphi 0, %s114
    $region4: #{tpu_custom_call.1} parent=1 // loop_header_branch
      %14 = sbr.rel (%p12) target = $region8
    $region5: #{tpu_custom_call.1} parent=1 // loop_body
      %s16 = ssub.s32 %s11, 1
      %s17 = ssub.s32 %s11, 2
      %s18 = sadd.s32 %s11, 1
      %s19 = ssub.s32 %s11, %s18
      %p20 = scmp.eq.s32.totalorder %s19, 0
      %s22 = sadd.s32 %s21, 1
      %s23 = scalar_select %p20, %s21, %s22
      %p26 = pneg %p20
      %p27 = scmp.eq.s32.totalorder %s11, 1
      %p28 = por %p26, %p27
      %p29 = scmp.ne.s32.totalorder %s21, %s24
      %p30 = scmp.eq.s32.totalorder %s11, 0
      %p31 = por %p29, %p30
      %p32 = scmp.ne.s32.totalorder %s21, %s24
      %p33 = scmp.eq.s32.totalorder %s16, 1
      %p34 = por %p32, %p33
      %p35 = scmp.ne.s32.totalorder %s24, %s25
      %p36 = scmp.eq.s32.totalorder %s16, 0
      %p37 = por %p35, %p36
      %p38 = scmp.ne.s32.totalorder %s24, %s25
      %p39 = scmp.eq.s32.totalorder %s17, 1
      %p40 = por %p38, %p39
      %p42 = scmp.ne.s32.totalorder %s25, %s41
      %p43 = scmp.eq.s32.totalorder %s17, 0
      %p44 = por %p42, %p43
      %s46 = sadd.s32 %s45, 1
      %p49 = scmp.eq.s32.totalorder %s11, 1
      %p50 = scmp.ne.s32.totalorder %s45, %s47
      %p51 = scmp.eq.s32.totalorder %s11, 0
      %p52 = por %p50, %p51
      %p53 = scmp.ne.s32.totalorder %s45, %s47
      %p54 = scmp.eq.s32.totalorder %s16, 1
      %p55 = por %p53, %p54
      %p56 = scmp.ne.s32.totalorder %s47, %s48
      %p57 = scmp.eq.s32.totalorder %s16, 0
      %p58 = por %p56, %p57
      %p59 = scmp.ne.s32.totalorder %s47, %s48
      %p60 = scmp.eq.s32.totalorder %s17, 1
      %p61 = por %p59, %p60
      %p63 = scmp.ne.s32.totalorder %s48, %s62
      %p64 = scmp.eq.s32.totalorder %s17, 0
      %p65 = por %p63, %p64
      %s67 = sadd.s32 %s66, 1
      %p70 = scmp.eq.s32.totalorder %s11, 1
      %p71 = scmp.ne.s32.totalorder %s66, %s68
      %p72 = scmp.eq.s32.totalorder %s11, 0
      %p73 = por %p71, %p72
      %p74 = scmp.ne.s32.totalorder %s66, %s68
      %p75 = scmp.eq.s32.totalorder %s16, 1
      %p76 = por %p74, %p75
      %p77 = scmp.ne.s32.totalorder %s68, %s69
      %p78 = scmp.eq.s32.totalorder %s16, 0
      %p79 = por %p77, %p78
      %p80 = scmp.ne.s32.totalorder %s68, %s69
      %p81 = scmp.eq.s32.totalorder %s17, 1
      %p82 = por %p80, %p81
      %p84 = scmp.ne.s32.totalorder %s69, %s83
      %p85 = scmp.eq.s32.totalorder %s17, 0
      %p86 = por %p84, %p85
      %s88 = sadd.s32 %s87, 1
      %p91 = scmp.eq.s32.totalorder %s11, 1
      %p92 = scmp.ne.s32.totalorder %s87, %s89
      %p93 = scmp.eq.s32.totalorder %s11, 0
      %p94 = por %p92, %p93
      %p95 = scmp.ne.s32.totalorder %s87, %s89
      %p96 = scmp.eq.s32.totalorder %s16, 1
      %p97 = por %p95, %p96
      %p98 = scmp.ne.s32.totalorder %s89, %s90
      %p99 = scmp.eq.s32.totalorder %s16, 0
      %p100 = por %p98, %p99
      %p101 = scmp.ne.s32.totalorder %s89, %s90
      %p102 = scmp.eq.s32.totalorder %s17, 1
      %p103 = por %p101, %p102
      %p105 = scmp.ne.s32.totalorder %s90, %s104
      %p106 = scmp.eq.s32.totalorder %s17, 0
      %p107 = por %p105, %p106
      %s108 = ssub.s32 %s11, %s18
      %p109 = scmp.eq.s32.totalorder %s108, 0
      %s111 = sadd.s32 %s110, 1
      %s112 = scalar_select %p109, %s110, %s111
      %p115 = pneg %p109
      %p116 = scmp.eq.s32.totalorder %s11, 1
      %p117 = por %p115, %p116
      %p118 = scmp.ne.s32.totalorder %s110, %s113
      %p119 = scmp.eq.s32.totalorder %s11, 0
      %p120 = por %p118, %p119
      %p121 = scmp.ne.s32.totalorder %s110, %s113
      %p122 = scmp.eq.s32.totalorder %s16, 1
      %p123 = por %p121, %p122
      %p124 = scmp.ne.s32.totalorder %s113, %s114
      %p125 = scmp.eq.s32.totalorder %s16, 0
      %p126 = por %p124, %p125
      %p127 = scmp.ne.s32.totalorder %s113, %s114
      %p128 = scmp.eq.s32.totalorder %s17, 1
      %p129 = por %p127, %p128
      %p131 = scmp.ne.s32.totalorder %s114, %s130
      %p132 = scmp.eq.s32.totalorder %s17, 0
      %p133 = por %p131, %p132
      %p134 = scmp.le.s32.totalorder 1, %s11
      %p135 = scmp.lt.s32.totalorder %s11, 3
      %p136 = pnand %p134, %p135
      %p137 = pneg %p136
      // Predicated region
      $region9: #{tpu_custom_call.1} parent=5 // pred_check
        _
      $region10: #{tpu_custom_call.1} parent=5 // pred_check_branch
        %139 = sbr.rel (%p136) target = $region12
      $region11: #{tpu_custom_call.1} parent=5 // pred_region
        %s140 = ssub.s32 %s11, 1
        // Predicated region
        $region13: #{tpu_custom_call.1} parent=11 // pred_check
          %p141 = pneg %p58
        $region14: #{tpu_custom_call.1} parent=11 // pred_check_branch
          %143 = sbr.rel (%p141) target = $region16
        $region15: #{tpu_custom_call.1} parent=11 // pred_region
          _
        $region16: #{tpu_custom_call.1} parent=11 // pred_fallthru
          _
        // Predicated region
        $region17: #{tpu_custom_call.1} parent=11 // pred_check
          %p144 = pneg %p79
        $region18: #{tpu_custom_call.1} parent=11 // pred_check_branch
          %146 = sbr.rel (%p144) target = $region20
        $region19: #{tpu_custom_call.1} parent=11 // pred_region
          %148 = vsyncadd [#allocation3], 0
          %s149 = sshll.u32 %s2, 4
          %s150 = int_to_ptr.hbm [resolvable:$true] %s149
          %s151 = sshll.u32 [#allocation2], 4
          %s152 = int_to_ptr.vmem [resolvable:$true] %s151
          %157 = dma.hbm_to_vmem [thread:$0]  %s150, 4096, %s152, [#allocation3], 128, 128, 8
        $region20: #{tpu_custom_call.1} parent=11 // pred_fallthru
          _
        // Predicated region
        $region21: #{tpu_custom_call.1} parent=11 // pred_check
          %p158 = pneg %p100
        $region22: #{tpu_custom_call.1} parent=11 // pred_check_branch
          %160 = sbr.rel (%p158) target = $region24
        $region23: #{tpu_custom_call.1} parent=11 // pred_region
          _
        $region24: #{tpu_custom_call.1} parent=11 // pred_fallthru
          _
      $region12: #{tpu_custom_call.1} parent=5 // pred_fallthru
        _
      %p161 = scmp.lt.s32.totalorder %s11, 2
      // Predicated region
      $region25: #{tpu_custom_call.1} parent=5 // pred_check
        %p162 = pneg %p161
      $region26: #{tpu_custom_call.1} parent=5 // pred_check_branch
        %164 = sbr.rel (%p162) target = $region28
      $region27: #{tpu_custom_call.1} parent=5 // pred_region
        // Predicated region
        $region29: #{tpu_custom_call.1} parent=27 // pred_check
          %p165 = pneg %p31
        $region30: #{tpu_custom_call.1} parent=27 // pred_check_branch
          %167 = sbr.rel (%p165) target = $region32
        $region31: #{tpu_custom_call.1} parent=27 // pred_region
          %p168 = scmp.lt.s32.totalorder %s11, 1
          %s169 = scalar_select %p168, %s11, 1
          %s170 = smul.addr %s169, 3
          %s171 = smul.addr %s170, 8
          %s172 = scalar_lea.vmem %s0, %s171
        $region32: #{tpu_custom_call.1} parent=27 // pred_fallthru
          _
      $region28: #{tpu_custom_call.1} parent=5 // pred_fallthru
        _
      %p173 = scmp.le.s32.totalorder 1, %s11
      %p174 = scmp.lt.s32.totalorder %s11, 3
      %p175 = pnand %p173, %p174
      %p176 = pneg %p175
      // Predicated region
      $region33: #{tpu_custom_call.1} parent=5 // pred_check
        _
      $region34: #{tpu_custom_call.1} parent=5 // pred_check_branch
        %178 = sbr.rel (%p175) target = $region36
      $region35: #{tpu_custom_call.1} parent=5 // pred_region
        %s179 = ssub.s32 %s11, 1
        // Predicated region
        $region37: #{tpu_custom_call.1} parent=35 // pred_check
          %p180 = pneg %p79
        $region38: #{tpu_custom_call.1} parent=35 // pred_check_branch
          %182 = sbr.rel (%p180) target = $region40
        $region39: #{tpu_custom_call.1} parent=35 // pred_region
          %184 = dma.done [#allocation3], 4096
        $region40: #{tpu_custom_call.1} parent=35 // pred_fallthru
          _
        %p185 = scmp.lt.s32.totalorder %s16, 1
        %s186 = scalar_select %p185, %s16, 1
        %s187 = smul.addr %s186, 3
        %s188 = smul.addr %s187, 8
        %s189 = scalar_lea.vmem %s0, %s188
        %p190 = pneg %p37
        %p191 = pneg %p34
        %p192 = pneg %p58
        %p193 = pneg %p55
        %p194 = pneg %p79
        %p195 = pneg %p76
        %p196 = pneg %p100
        %p197 = pneg %p97
        %p198 = pneg %p126
        %p199 = pneg %p123
        %p200 = scmp.lt.s32.totalorder %s16, 1
        %s201 = scalar_select %p200, %s16, 1
        %s202 = smul.addr %s201, 6
        %s203 = smul.addr %s202, 8
        %s204 = scalar_lea.vmem %s4, %s203
        %p205 = scmp.lt.s32.totalorder %s16, 1
        %s206 = scalar_select %p205, %s16, 1
        %s207 = smul.addr %s206, 3
        %s208 = smul.addr %s207, 8
        %s209 = scalar_lea.vmem %s0, %s208
        %p210 = scmp.lt.s32.totalorder %s16, 1
        %s211 = scalar_select %p210, %s16, 1
        %s212 = smul.addr %s211, 6
        %s213 = smul.addr %s212, 8
        %s214 = scalar_lea.vmem %s4, %s213
        %v215 = vld [vmem:[%s209] sm:$0xff]
        %v216 = vld [vmem:[%s209 + $0x8] sm:$0xff]
        %v217 = vld [vmem:[%s209 + $0x10] sm:$0x3]
        %v218 = vld [vmem:[%s1] sm:$0x1]
        %v219 = vadd.f32 %v218, 1e-09
        %v220 = vrcp.pop %v219
        %v222 = vperm.slane %v218, 0
        %v224 = vmul.f32 %v222, %v215
        %v225 = vmul.f32 %v222, %v216
        %v226 = vmul.f32 %v222, %v217
        %v227 = vand.u32 2147483647, %v224
        %vm228 = vcmp.le.f32.partialorder %v227, 0.7853982
        %vm229 = vcmp.lt.s32.totalorder %v224, 0
        %v230 = vand.u32 %v224, 2139095040
        %v231 = vshrl.u32 %v230, 23
        %v232 = vsub.s32 %v231, 127
        %v233 = vand.u32 2147483647, %v224
        %v234 = vand.u32 %v233, 8388607
        %v235 = vor.u32 %v234, 8388608
        %v236 = vsub.s32 0, %v235
        %v237 = vadd.s32 %v232, 1
        %vm238 = vcmp.gt.s32.totalorder %v237, 0
        %v239 = vsel %vm238, %v237, 0
        %v240 = vshrl.u32 %v239, 5
        %v241 = vand.u32 %v239, 31
        %v242 = vsub.s32 32, %v241
        %v243 = vshrl.u32 683565275, %v242
        %v244 = vshll.u32 683565275, %v241
        %v245 = vshrl.u32 2475754826, %v242
        %v246 = vor.u32 %v244, %v245
        %v247 = vshll.u32 2475754826, %v241
        %v248 = vshrl.u32 2131351028, %v242
        %v249 = vor.u32 %v247, %v248
        %v250 = vshll.u32 2131351028, %v241
        %v251 = vshrl.u32 2102212464, %v242
        %v252 = vor.u32 %v250, %v251
        %v253 = vshll.u32 2102212464, %v241
        %v254 = vshrl.u32 920167782, %v242
        %v255 = vor.u32 %v253, %v254
        %v256 = vshll.u32 920167782, %v241
        %v257 = vshrl.u32 1326507024, %v242
        %v258 = vor.u32 %v256, %v257
        %vm259 = vcmp.lt.s32.totalorder %v240, 1
        %vm260 = vcmp.lt.s32.totalorder %v240, 2
        %vm261 = vcmp.lt.s32.totalorder %v240, 3
        %vm262 = vcmp.lt.s32.totalorder %v240, 4
        %v263 = vsel %vm259, %v243, %v246
        %v264 = vsel %vm262, %v252, 2102212464
        %v265 = vsel %vm261, %v249, %v264
        %v266 = vsel %vm260, %v263, %v265
        %v267 = vsel %vm259, %v246, %v249
        %v268 = vsel %vm262, %v255, 920167782
        %v269 = vsel %vm261, %v252, %v268
        %v270 = vsel %vm260, %v267, %v269
        %v271 = vsel %vm259, %v249, %v252
        %v272 = vsel %vm262, %v258, 1326507024
        %v273 = vsel %vm261, %v255, %v272
        %v274 = vsel %vm260, %v271, %v273
        %v275 = vshll.u32 %v235, 8
        %v276 = vand.u32 %v275, 65535
        %v277 = vshrl.u32 %v275, 16
        %v278 = vand.u32 %v274, 65535
        %v279 = vshrl.u32 %v274, 16
        %v280 = vmul.u32 %v276, %v278
        %v281 = vmul.u32 %v276, %v279
        %v282 = vmul.u32 %v277, %v278
        %v283 = vmul.u32 %v277, %v279
        %v284 = vshll.u32 %v281, 16
        %v285 = vshrl.u32 %v281, 16
        %v286 = vshll.u32 %v282, 16
        %v287 = vshrl.u32 %v282, 16
        %vm288 = vc.u32 %v280, %v284
        %v289 = vsel %vm288, 1, 0
        %v290 = vadd.s32 %v280, %v284
        %v291 = vadd.s32 %v283, %v289
        %vm292 = vc.u32 %v290, %v286
        %v293 = vsel %vm292, 1, 0
        %v294 = vadd.s32 %v290, %v286
        %v295 = vadd.s32 %v291, %v293
        %v296 = vadd.s32 %v295, %v285
        %v297 = vadd.s32 %v296, %v287
        %v298 = vand.u32 %v275, 65535
        %v299 = vshrl.u32 %v275, 16
        %v300 = vand.u32 %v270, 65535
        %v301 = vshrl.u32 %v270, 16
        %v302 = vmul.u32 %v298, %v300
        %v303 = vmul.u32 %v298, %v301
        %v304 = vmul.u32 %v299, %v300
        %v305 = vmul.u32 %v299, %v301
        %v306 = vshll.u32 %v303, 16
        %v307 = vshrl.u32 %v303, 16
        %v308 = vshll.u32 %v304, 16
        %v309 = vshrl.u32 %v304, 16
        %vm310 = vc.u32 %v302, %v306
        %v311 = vsel %vm310, 1, 0
        %v312 = vadd.s32 %v302, %v306
        %v313 = vadd.s32 %v305, %v311
        %vm314 = vc.u32 %v312, %v308
        %v315 = vsel %vm314, 1, 0
        %v316 = vadd.s32 %v312, %v308
        %v317 = vadd.s32 %v313, %v315
        %v318 = vadd.s32 %v317, %v307
        %v319 = vadd.s32 %v318, %v309
        %v320 = vmul.u32 %v275, %v266
        %v321 = vadd.s32 %v297, %v316
        %vm322 = vc.u32 %v297, %v316
        %v323 = vadd.s32 %v319, 1
        %v324 = vsel %vm322, %v323, %v319
        %v325 = vadd.s32 %v320, %v324
        %v326 = vadd.s32 %v325, 536870912
        %v327 = vshrl.u32 %v326, 30
        %v328 = vshll.u32 %v327, 30
        %v329 = vsub.s32 %v325, %v328
        %vm330 = vcmp.lt.s32.totalorder %v329, 0
        %v331 = vsub.s32 0, %v329
        %v332 = vsel %vm330, %v331, %v329
        %v333 = vclz %v332
        %v334 = vsub.s32 %v333, 2
        %vm335 = vcmp.gt.s32.totalorder 0, %v334
        %v336 = vsel %vm335, 0, %v334
        %v337 = vsub.s32 32, %v336
        %v338 = vshll.u32 %v329, %v336
        %v339 = vshrl.u32 %v321, %v337
        %v340 = vor.u32 %v338, %v339
        %v341 = vsub.s32 4294967266, %v336
        %v342 = vadd.s32 %v341, 127
        %v343 = vshll.u32 %v342, 23
        %v344 = vor.u32 4788187, %v343
        %v345 = vand.u32 2147483647, %v344
        %v347 = vcvt.s32.f32 %v340
        %v348 = vmul.f32 %v347, %v345
        %v349 = vxor.u32 %v348, 2147483648
        %v350 = vsel %vm229, %v349, %v348
        %v351 = vsub.s32 4, %v327
        %v352 = vsel %vm229, %v351, %v327
        %v353 = vsel %vm228, %v224, %v350
        %v354 = vsel %vm228, 0, %v352
        %v355 = vmul.f32 %v353, %v353
        %v356 = vmul.f32 %v355, -0.001358992
        %v357 = vadd.f32 %v356, 0.041655596
        %v358 = vmul.f32 %v355, %v357
        %v359 = vadd.f32 %v358, -0.4999988
        %v360 = vmul.f32 %v355, %v359
        %v361 = vadd.f32 1.0, %v360
        %v362 = vmul.f32 %v353, %v353
        %v363 = vmul.f32 %v362, -0.00019511016
        %v364 = vadd.f32 %v363, 0.008332121
        %v365 = vmul.f32 %v362, %v364
        %v366 = vadd.f32 %v365, -0.16666654
        %v367 = vmul.f32 %v362, %v366
        %v368 = vadd.f32 %v367, 1.0
        %v369 = vmul.f32 %v368, %v353
        %vm370 = vweird.f32 %v224
        %v371 = vadd.s32 %v354, 3
        %v372 = vand.u32 %v371, 3
        %vm373 = vcmp.lt.s32.totalorder %v372, 2
        %vm374 = vcmp.eq.s32.totalorder %v372, 0
        %v375 = vxor.u32 %v369, 2147483648
        %v376 = vsel %vm374, %v361, %v375
        %vm377 = vcmp.eq.s32.totalorder %v372, 2
        %v378 = vxor.u32 %v361, 2147483648
        %v379 = vsel %vm377, %v378, %v369
        %v380 = vsel %vm373, %v376, %v379
        %v381 = vsel %vm370, nan, %v380
        %v382 = vand.u32 2147483647, %v225
        %vm383 = vcmp.le.f32.partialorder %v382, 0.7853982
        %vm384 = vcmp.lt.s32.totalorder %v225, 0
        %v385 = vand.u32 %v225, 2139095040
        %v386 = vshrl.u32 %v385, 23
        %v387 = vsub.s32 %v386, 127
        %v388 = vand.u32 2147483647, %v225
        %v389 = vand.u32 %v388, 8388607
        %v390 = vor.u32 %v389, 8388608
        %v391 = vsub.s32 0, %v390
        %v392 = vadd.s32 %v387, 1
        %vm393 = vcmp.gt.s32.totalorder %v392, 0
        %v394 = vsel %vm393, %v392, 0
        %v395 = vshrl.u32 %v394, 5
        %v396 = vand.u32 %v394, 31
        %v397 = vsub.s32 32, %v396
        %v398 = vshrl.u32 683565275, %v397
        %v399 = vshll.u32 683565275, %v396
        %v400 = vshrl.u32 2475754826, %v397
        %v401 = vor.u32 %v399, %v400
        %v402 = vshll.u32 2475754826, %v396
        %v403 = vshrl.u32 2131351028, %v397
        %v404 = vor.u32 %v402, %v403
        %v405 = vshll.u32 2131351028, %v396
        %v406 = vshrl.u32 2102212464, %v397
        %v407 = vor.u32 %v405, %v406
        %v408 = vshll.u32 2102212464, %v396
        %v409 = vshrl.u32 920167782, %v397
        %v410 = vor.u32 %v408, %v409
        %v411 = vshll.u32 920167782, %v396
        %v412 = vshrl.u32 1326507024, %v397
        %v413 = vor.u32 %v411, %v412
        %vm414 = vcmp.lt.s32.totalorder %v395, 1
        %vm415 = vcmp.lt.s32.totalorder %v395, 2
        %vm416 = vcmp.lt.s32.totalorder %v395, 3
        %vm417 = vcmp.lt.s32.totalorder %v395, 4
        %v418 = vsel %vm414, %v398, %v401
        %v419 = vsel %vm417, %v407, 2102212464
        %v420 = vsel %vm416, %v404, %v419
        %v421 = vsel %vm415, %v418, %v420
        %v422 = vsel %vm414, %v401, %v404
        %v423 = vsel %vm417, %v410, 920167782
        %v424 = vsel %vm416, %v407, %v423
        %v425 = vsel %vm415, %v422, %v424
        %v426 = vsel %vm414, %v404, %v407
        %v427 = vsel %vm417, %v413, 1326507024
        %v428 = vsel %vm416, %v410, %v427
        %v429 = vsel %vm415, %v426, %v428
        %v430 = vshll.u32 %v390, 8
        %v431 = vand.u32 %v430, 65535
        %v432 = vshrl.u32 %v430, 16
        %v433 = vand.u32 %v429, 65535
        %v434 = vshrl.u32 %v429, 16
        %v435 = vmul.u32 %v431, %v433
        %v436 = vmul.u32 %v431, %v434
        %v437 = vmul.u32 %v432, %v433
        %v438 = vmul.u32 %v432, %v434
        %v439 = vshll.u32 %v436, 16
        %v440 = vshrl.u32 %v436, 16
        %v441 = vshll.u32 %v437, 16
        %v442 = vshrl.u32 %v437, 16
        %vm443 = vc.u32 %v435, %v439
        %v444 = vsel %vm443, 1, 0
        %v445 = vadd.s32 %v435, %v439
        %v446 = vadd.s32 %v438, %v444
        %vm447 = vc.u32 %v445, %v441
        %v448 = vsel %vm447, 1, 0
        %v449 = vadd.s32 %v445, %v441
        %v450 = vadd.s32 %v446, %v448
        %v451 = vadd.s32 %v450, %v440
        %v452 = vadd.s32 %v451, %v442
        %v453 = vand.u32 %v430, 65535
        %v454 = vshrl.u32 %v430, 16
        %v455 = vand.u32 %v425, 65535
        %v456 = vshrl.u32 %v425, 16
        %v457 = vmul.u32 %v453, %v455
        %v458 = vmul.u32 %v453, %v456
        %v459 = vmul.u32 %v454, %v455
        %v460 = vmul.u32 %v454, %v456
        %v461 = vshll.u32 %v458, 16
        %v462 = vshrl.u32 %v458, 16
        %v463 = vshll.u32 %v459, 16
        %v464 = vshrl.u32 %v459, 16
        %vm465 = vc.u32 %v457, %v461
        %v466 = vsel %vm465, 1, 0
        %v467 = vadd.s32 %v457, %v461
        %v468 = vadd.s32 %v460, %v466
        %vm469 = vc.u32 %v467, %v463
        %v470 = vsel %vm469, 1, 0
        %v471 = vadd.s32 %v467, %v463
        %v472 = vadd.s32 %v468, %v470
        %v473 = vadd.s32 %v472, %v462
        %v474 = vadd.s32 %v473, %v464
        %v475 = vmul.u32 %v430, %v421
        %v476 = vadd.s32 %v452, %v471
        %vm477 = vc.u32 %v452, %v471
        %v478 = vadd.s32 %v474, 1
        %v479 = vsel %vm477, %v478, %v474
        %v480 = vadd.s32 %v475, %v479
        %v481 = vadd.s32 %v480, 536870912
        %v482 = vshrl.u32 %v481, 30
        %v483 = vshll.u32 %v482, 30
        %v484 = vsub.s32 %v480, %v483
        %vm485 = vcmp.lt.s32.totalorder %v484, 0
        %v486 = vsub.s32 0, %v484
        %v487 = vsel %vm485, %v486, %v484
        %v488 = vclz %v487
        %v489 = vsub.s32 %v488, 2
        %vm490 = vcmp.gt.s32.totalorder 0, %v489
        %v491 = vsel %vm490, 0, %v489
        %v492 = vsub.s32 32, %v491
        %v493 = vshll.u32 %v484, %v491
        %v494 = vshrl.u32 %v476, %v492
        %v495 = vor.u32 %v493, %v494
        %v496 = vsub.s32 4294967266, %v491
        %v497 = vadd.s32 %v496, 127
        %v498 = vshll.u32 %v497, 23
        %v499 = vor.u32 4788187, %v498
        %v500 = vand.u32 2147483647, %v499
        %v502 = vcvt.s32.f32 %v495
        %v503 = vmul.f32 %v502, %v500
        %v504 = vxor.u32 %v503, 2147483648
        %v505 = vsel %vm384, %v504, %v503
        %v506 = vsub.s32 4, %v482
        %v507 = vsel %vm384, %v506, %v482
        %v508 = vsel %vm383, %v225, %v505
        %v509 = vsel %vm383, 0, %v507
        %v510 = vmul.f32 %v508, %v508
        %v511 = vmul.f32 %v510, -0.001358992
        %v512 = vadd.f32 %v511, 0.041655596
        %v513 = vmul.f32 %v510, %v512
        %v514 = vadd.f32 %v513, -0.4999988
        %v515 = vmul.f32 %v510, %v514
        %v516 = vadd.f32 1.0, %v515
        %v517 = vmul.f32 %v508, %v508
        %v518 = vmul.f32 %v517, -0.00019511016
        %v519 = vadd.f32 %v518, 0.008332121
        %v520 = vmul.f32 %v517, %v519
        %v521 = vadd.f32 %v520, -0.16666654
        %v522 = vmul.f32 %v517, %v521
        %v523 = vadd.f32 %v522, 1.0
        %v524 = vmul.f32 %v523, %v508
        %vm525 = vweird.f32 %v225
        %v526 = vadd.s32 %v509, 3
        %v527 = vand.u32 %v526, 3
        %vm528 = vcmp.lt.s32.totalorder %v527, 2
        %vm529 = vcmp.eq.s32.totalorder %v527, 0
        %v530 = vxor.u32 %v524, 2147483648
        %v531 = vsel %vm529, %v516, %v530
        %vm532 = vcmp.eq.s32.totalorder %v527, 2
        %v533 = vxor.u32 %v516, 2147483648
        %v534 = vsel %vm532, %v533, %v524
        %v535 = vsel %vm528, %v531, %v534
        %v536 = vsel %vm525, nan, %v535
        %v537 = vand.u32 2147483647, %v226
        %vm538 = vcmp.le.f32.partialorder %v537, 0.7853982
        %vm539 = vcmp.lt.s32.totalorder %v226, 0
        %v540 = vand.u32 %v226, 2139095040
        %v541 = vshrl.u32 %v540, 23
        %v542 = vsub.s32 %v541, 127
        %v543 = vand.u32 2147483647, %v226
        %v544 = vand.u32 %v543, 8388607
        %v545 = vor.u32 %v544, 8388608
        %v546 = vsub.s32 0, %v545
        %v547 = vadd.s32 %v542, 1
        %vm548 = vcmp.gt.s32.totalorder %v547, 0
        %v549 = vsel %vm548, %v547, 0
        %v550 = vshrl.u32 %v549, 5
        %v551 = vand.u32 %v549, 31
        %v552 = vsub.s32 32, %v551
        %v553 = vshrl.u32 683565275, %v552
        %v554 = vshll.u32 683565275, %v551
        %v555 = vshrl.u32 2475754826, %v552
        %v556 = vor.u32 %v554, %v555
        %v557 = vshll.u32 2475754826, %v551
        %v558 = vshrl.u32 2131351028, %v552
        %v559 = vor.u32 %v557, %v558
        %v560 = vshll.u32 2131351028, %v551
        %v561 = vshrl.u32 2102212464, %v552
        %v562 = vor.u32 %v560, %v561
        %v563 = vshll.u32 2102212464, %v551
        %v564 = vshrl.u32 920167782, %v552
        %v565 = vor.u32 %v563, %v564
        %v566 = vshll.u32 920167782, %v551
        %v567 = vshrl.u32 1326507024, %v552
        %v568 = vor.u32 %v566, %v567
        %vm569 = vcmp.lt.s32.totalorder %v550, 1
        %vm570 = vcmp.lt.s32.totalorder %v550, 2
        %vm571 = vcmp.lt.s32.totalorder %v550, 3
        %vm572 = vcmp.lt.s32.totalorder %v550, 4
        %v573 = vsel %vm569, %v553, %v556
        %v574 = vsel %vm572, %v562, 2102212464
        %v575 = vsel %vm571, %v559, %v574
        %v576 = vsel %vm570, %v573, %v575
        %v577 = vsel %vm569, %v556, %v559
        %v578 = vsel %vm572, %v565, 920167782
        %v579 = vsel %vm571, %v562, %v578
        %v580 = vsel %vm570, %v577, %v579
        %v581 = vsel %vm569, %v559, %v562
        %v582 = vsel %vm572, %v568, 1326507024
        %v583 = vsel %vm571, %v565, %v582
        %v584 = vsel %vm570, %v581, %v583
        %v585 = vshll.u32 %v545, 8
        %v586 = vand.u32 %v585, 65535
        %v587 = vshrl.u32 %v585, 16
        %v588 = vand.u32 %v584, 65535
        %v589 = vshrl.u32 %v584, 16
        %v590 = vmul.u32 %v586, %v588
        %v591 = vmul.u32 %v586, %v589
        %v592 = vmul.u32 %v587, %v588
        %v593 = vmul.u32 %v587, %v589
        %v594 = vshll.u32 %v591, 16
        %v595 = vshrl.u32 %v591, 16
        %v596 = vshll.u32 %v592, 16
        %v597 = vshrl.u32 %v592, 16
        %vm598 = vc.u32 %v590, %v594
        %v599 = vsel %vm598, 1, 0
        %v600 = vadd.s32 %v590, %v594
        %v601 = vadd.s32 %v593, %v599
        %vm602 = vc.u32 %v600, %v596
        %v603 = vsel %vm602, 1, 0
        %v604 = vadd.s32 %v600, %v596
        %v605 = vadd.s32 %v601, %v603
        %v606 = vadd.s32 %v605, %v595
        %v607 = vadd.s32 %v606, %v597
        %v608 = vand.u32 %v585, 65535
        %v609 = vshrl.u32 %v585, 16
        %v610 = vand.u32 %v580, 65535
        %v611 = vshrl.u32 %v580, 16
        %v612 = vmul.u32 %v608, %v610
        %v613 = vmul.u32 %v608, %v611
        %v614 = vmul.u32 %v609, %v610
        %v615 = vmul.u32 %v609, %v611
        %v616 = vshll.u32 %v613, 16
        %v617 = vshrl.u32 %v613, 16
        %v618 = vshll.u32 %v614, 16
        %v619 = vshrl.u32 %v614, 16
        %vm620 = vc.u32 %v612, %v616
        %v621 = vsel %vm620, 1, 0
        %v622 = vadd.s32 %v612, %v616
        %v623 = vadd.s32 %v615, %v621
        %vm624 = vc.u32 %v622, %v618
        %v625 = vsel %vm624, 1, 0
        %v626 = vadd.s32 %v622, %v618
        %v627 = vadd.s32 %v623, %v625
        %v628 = vadd.s32 %v627, %v617
        %v629 = vadd.s32 %v628, %v619
        %v630 = vmul.u32 %v585, %v576
        %v631 = vadd.s32 %v607, %v626
        %vm632 = vc.u32 %v607, %v626
        %v633 = vadd.s32 %v629, 1
        %v634 = vsel %vm632, %v633, %v629
        %v635 = vadd.s32 %v630, %v634
        %v636 = vadd.s32 %v635, 536870912
        %v637 = vshrl.u32 %v636, 30
        %v638 = vshll.u32 %v637, 30
        %v639 = vsub.s32 %v635, %v638
        %vm640 = vcmp.lt.s32.totalorder %v639, 0
        %v641 = vsub.s32 0, %v639
        %v642 = vsel %vm640, %v641, %v639
        %v643 = vclz %v642
        %v644 = vsub.s32 %v643, 2
        %vm645 = vcmp.gt.s32.totalorder 0, %v644
        %v646 = vsel %vm645, 0, %v644
        %v647 = vsub.s32 32, %v646
        %v648 = vshll.u32 %v639, %v646
        %v649 = vshrl.u32 %v631, %v647
        %v650 = vor.u32 %v648, %v649
        %v651 = vsub.s32 4294967266, %v646
        %v652 = vadd.s32 %v651, 127
        %v653 = vshll.u32 %v652, 23
        %v654 = vor.u32 4788187, %v653
        %v655 = vand.u32 2147483647, %v654
        %v657 = vcvt.s32.f32 %v650
        %v658 = vmul.f32 %v657, %v655
        %v659 = vxor.u32 %v658, 2147483648
        %v660 = vsel %vm539, %v659, %v658
        %v661 = vsub.s32 4, %v637
        %v662 = vsel %vm539, %v661, %v637
        %v663 = vsel %vm538, %v226, %v660
        %v664 = vsel %vm538, 0, %v662
        %v665 = vmul.f32 %v663, %v663
        %v666 = vmul.f32 %v665, -0.001358992
        %v667 = vadd.f32 %v666, 0.041655596
        %v668 = vmul.f32 %v665, %v667
        %v669 = vadd.f32 %v668, -0.4999988
        %v670 = vmul.f32 %v665, %v669
        %v671 = vadd.f32 1.0, %v670
        %v672 = vmul.f32 %v663, %v663
        %v673 = vmul.f32 %v672, -0.00019511016
        %v674 = vadd.f32 %v673, 0.008332121
        %v675 = vmul.f32 %v672, %v674
        %v676 = vadd.f32 %v675, -0.16666654
        %v677 = vmul.f32 %v672, %v676
        %v678 = vadd.f32 %v677, 1.0
        %v679 = vmul.f32 %v678, %v663
        %vm680 = vweird.f32 %v226
        %v681 = vadd.s32 %v664, 3
        %v682 = vand.u32 %v681, 3
        %vm683 = vcmp.lt.s32.totalorder %v682, 2
        %vm684 = vcmp.eq.s32.totalorder %v682, 0
        %v685 = vxor.u32 %v679, 2147483648
        %v686 = vsel %vm684, %v671, %v685
        %vm687 = vcmp.eq.s32.totalorder %v682, 2
        %v688 = vxor.u32 %v671, 2147483648
        %v689 = vsel %vm687, %v688, %v679
        %v690 = vsel %vm683, %v686, %v689
        %v691 = vsel %vm680, nan, %v690
        %v692 = vmul.f32 %v381, %v381
        %v693 = vmul.f32 %v536, %v536
        %v694 = vmul.f32 %v691, %v691
        %v696 = vperm.slane %v220, 0
        %v698 = vmul.f32 %v692, %v696
        %v699 = vmul.f32 %v693, %v696
        %v700 = vmul.f32 %v694, %v696
        %v701 = vadd.f32 %v215, %v698
        %v702 = vadd.f32 %v216, %v699
        %v703 = vadd.f32 %v217, %v700
        %vm707 = vcmask 1040384
        %v708 = vrot.slane %v701, 7
        %v709 = vrot.slane %v702, 7
        %v710 = vsel %vm707, %v708, %v709
        %v711 = vrot.slane %v703, 7
        %v712 = vsel %vm707, %v709, %v711
        %v716 = vpack.c.bf16 %v702, %v701
        %v717 = vpack.c.bf16 %v710, %v708
        %v718 = vpack.c.bf16 %v703, %v703
        %v719 = vpack.c.bf16 %v712, %v712
        %v720 = vld [vmem:[#allocation2] sm:$0xff]
        %v721 = vld [vmem:[#allocation2 + $0x8] sm:$0xff]
        %v722 = vld [vmem:[#allocation2 + $0x10] sm:$0xff]
        %v723 = vld [vmem:[#allocation2 + $0x18] sm:$0xff]
        %v724 = vld [vmem:[#allocation2 + $0x20] sm:$0xff]
        %v725 = vld [vmem:[#allocation2 + $0x28] sm:$0xff]
        %v726 = vld [vmem:[#allocation2 + $0x30] sm:$0xff]
        %v727 = vld [vmem:[#allocation2 + $0x38] sm:$0xff]
        %v728 = vld [vmem:[#allocation2 + $0x40] sm:$0xff]
        %v729 = vld [vmem:[#allocation2 + $0x48] sm:$0xff]
        %v730 = vld [vmem:[#allocation2 + $0x50] sm:$0xff]
        %v731 = vld [vmem:[#allocation2 + $0x58] sm:$0xff]
        %v732 = vld [vmem:[#allocation2 + $0x60] sm:$0xff]
        %v733 = vld [vmem:[#allocation2 + $0x68] sm:$0xff]
        %v734 = vld [vmem:[#allocation2 + $0x70] sm:$0xff]
        %v735 = vld [vmem:[#allocation2 + $0x78] sm:$0xff]
        %v736 = vld [vmem:[#allocation2 + $0x80] sm:$0xff]
        %v737 = vld [vmem:[#allocation2 + $0x88] sm:$0xff]
        %v738 = vld [vmem:[#allocation2 + $0x90] sm:$0xff]
        %v739 = vld [vmem:[#allocation2 + $0x98] sm:$0xff]
        %v740 = vld [vmem:[#allocation2 + $0xa0] sm:$0xff]
        %v741 = vld [vmem:[#allocation2 + $0xa8] sm:$0xff]
        %v742 = vld [vmem:[#allocation2 + $0xb0] sm:$0xff]
        %v743 = vld [vmem:[#allocation2 + $0xb8] sm:$0xff]
        %v744 = vld [vmem:[#allocation2 + $0xc0] sm:$0xff]
        %v745 = vld [vmem:[#allocation2 + $0xc8] sm:$0xff]
        %v746 = vld [vmem:[#allocation2 + $0xd0] sm:$0xff]
        %v747 = vld [vmem:[#allocation2 + $0xd8] sm:$0xff]
        %v748 = vld [vmem:[#allocation2 + $0xe0] sm:$0xff]
        %v749 = vld [vmem:[#allocation2 + $0xe8] sm:$0xff]
        %v750 = vld [vmem:[#allocation2 + $0xf0] sm:$0xff]
        %v751 = vld [vmem:[#allocation2 + $0xf8] sm:$0xff]
        %v752 = vld [vmem:[%s3] sm:$0x3]
        %v754 = vperm.slane %v752, 0
        %v755 = vperm.slane %v752, 1
        %vm758 = vsmask.f32 7424
        %v760 = vshrl.u32 %v716, 16
        %v762 = vshll.u32 %v716, 16
        %v764 = vrot.slane %v762, 1
        %v765 = vor.u32 %v760, %v764
        %v767 = vshll.u32 %v718, 16
        %v769 = vrot.slane %v767, 1
        %v770 = vsel %vm758, %v765, %v769
        %v772 = vshrl.u32 %v717, 16
        %v774 = vshll.u32 %v717, 16
        %v776 = vrot.slane %v774, 1
        %v777 = vor.u32 %v772, %v776
        %v779 = vshll.u32 %v719, 16
        %v781 = vrot.slane %v779, 1
        %v782 = vsel %vm758, %v777, %v781
        %v783 = vshrl.u32 %v718, 16
        %v785 = vshrl.u32 %v719, 16
        %v823 = vunpack.c.l.b16 %v720
        %v824 = vunpack.c.h.b16 %v720
        %v825 = vunpack.c.l.b16 %v721
        %v826 = vunpack.c.h.b16 %v721
        %v827 = vunpack.c.l.b16 %v722
        %v828 = vunpack.c.h.b16 %v722
        %v829 = vunpack.c.l.b16 %v723
        %v830 = vunpack.c.h.b16 %v723
        %v831 = vunpack.c.l.b16 %v724
        %v832 = vunpack.c.h.b16 %v724
        %v833 = vunpack.c.l.b16 %v725
        %v834 = vunpack.c.h.b16 %v725
        %v835 = vunpack.c.l.b16 %v726
        %v836 = vunpack.c.h.b16 %v726
        %v837 = vunpack.c.l.b16 %v727
        %v838 = vunpack.c.h.b16 %v727
        %v839 = vunpack.c.l.b16 %v728
        %v840 = vunpack.c.h.b16 %v728
        %v841 = vunpack.c.l.b16 %v729
        %v842 = vunpack.c.h.b16 %v729
        %v843 = vunpack.c.l.b16 %v730
        %v844 = vunpack.c.h.b16 %v730
        %v845 = vunpack.c.l.b16 %v731
        %v846 = vunpack.c.h.b16 %v731
        %v847 = vunpack.c.l.b16 %v732
        %v848 = vunpack.c.h.b16 %v732
        %v849 = vunpack.c.l.b16 %v733
        %v850 = vunpack.c.h.b16 %v733
        %v851 = vunpack.c.l.b16 %v734
        %v852 = vunpack.c.h.b16 %v734
        %v853 = vunpack.c.l.b16 %v735
        %v854 = vunpack.c.h.b16 %v735
        %v855 = vunpack.c.l.b16 %v736
        %v856 = vunpack.c.h.b16 %v736
        %v857 = vunpack.c.l.b16 %v737
        %v858 = vunpack.c.h.b16 %v737
        %v859 = vunpack.c.l.b16 %v738
        %v860 = vunpack.c.h.b16 %v738
        %v861 = vunpack.c.l.b16 %v739
        %v862 = vunpack.c.h.b16 %v739
        %v863 = vunpack.c.l.b16 %v740
        %v864 = vunpack.c.h.b16 %v740
        %v865 = vunpack.c.l.b16 %v741
        %v866 = vunpack.c.h.b16 %v741
        %v867 = vunpack.c.l.b16 %v742
        %v868 = vunpack.c.h.b16 %v742
        %v869 = vunpack.c.l.b16 %v743
        %v870 = vunpack.c.h.b16 %v743
        %v871 = vunpack.c.l.b16 %v744
        %v872 = vunpack.c.h.b16 %v744
        %v873 = vunpack.c.l.b16 %v745
        %v874 = vunpack.c.h.b16 %v745
        %v875 = vunpack.c.l.b16 %v746
        %v876 = vunpack.c.h.b16 %v746
        %v877 = vunpack.c.l.b16 %v747
        %v878 = vunpack.c.h.b16 %v747
        %v879 = vunpack.c.l.b16 %v748
        %v880 = vunpack.c.h.b16 %v748
        %v881 = vunpack.c.l.b16 %v749
        %v882 = vunpack.c.h.b16 %v749
        %v883 = vunpack.c.l.b16 %v750
        %v884 = vunpack.c.h.b16 %v750
        %v885 = vunpack.c.l.b16 %v751
        %v886 = vunpack.c.h.b16 %v751
        %v887 = vpack.c.b16 %v825, %v823
        %v888 = vpack.c.b16 %v826, %v824
        %v889 = vpack.c.b16 %v829, %v827
        %v890 = vpack.c.b16 %v830, %v828
        %v891 = vpack.c.b16 %v833, %v831
        %v892 = vpack.c.b16 %v834, %v832
        %v893 = vpack.c.b16 %v837, %v835
        %v894 = vpack.c.b16 %v838, %v836
        %v895 = vpack.c.b16 %v841, %v839
        %v896 = vpack.c.b16 %v842, %v840
        %v897 = vpack.c.b16 %v845, %v843
        %v898 = vpack.c.b16 %v846, %v844
        %v899 = vpack.c.b16 %v849, %v847
        %v900 = vpack.c.b16 %v850, %v848
        %v901 = vpack.c.b16 %v853, %v851
        %v902 = vpack.c.b16 %v854, %v852
        %v903 = vpack.c.b16 %v857, %v855
        %v904 = vpack.c.b16 %v858, %v856
        %v905 = vpack.c.b16 %v861, %v859
        %v906 = vpack.c.b16 %v862, %v860
        %v907 = vpack.c.b16 %v865, %v863
        %v908 = vpack.c.b16 %v866, %v864
        %v909 = vpack.c.b16 %v869, %v867
        %v910 = vpack.c.b16 %v870, %v868
        %v911 = vpack.c.b16 %v873, %v871
        %v912 = vpack.c.b16 %v874, %v872
        %v913 = vpack.c.b16 %v877, %v875
        %v914 = vpack.c.b16 %v878, %v876
        %v915 = vpack.c.b16 %v881, %v879
        %v916 = vpack.c.b16 %v882, %v880
        %v917 = vpack.c.b16 %v885, %v883
        %v918 = vpack.c.b16 %v886, %v884
        %951 = vmatpush.bf16.msra.mxu0 %v901
        %952 = vmatpush.bf16.msra.mxu0 %v899
        %953 = vmatpush.bf16.msra.mxu0 %v897
        %954 = vmatpush.bf16.msra.mxu0 %v895
        %955 = vmatpush.bf16.msra.mxu0 %v893
        %956 = vmatpush.bf16.msra.mxu0 %v891
        %957 = vmatpush.bf16.msra.mxu0 %v889
        %958 = vmatpush.bf16.msra.mxu0 %v887
        %959 = vmatmul.bf16.gmra.mxu0 %v770
        %v960 = vpop.f32.mrf.mxu0
        %v961 = vadd.f32 %v754, %v960
        %v962 = vpop.f32.mrf.mxu0
        %v963 = vadd.f32 %v754, %v962
        %964 = vmatmul.bf16.gmra.mxu0 %v783
        %v965 = vpop.f32.mrf.mxu0
        %v966 = vadd.f32 %v754, %v965
        %v967 = vpop.f32.mrf.mxu0
        %968 = vdwg.mxu0
        %969 = vmatpush.bf16.msra.mxu0 %v917
        %970 = vmatpush.bf16.msra.mxu0 %v915
        %971 = vmatpush.bf16.msra.mxu0 %v913
        %972 = vmatpush.bf16.msra.mxu0 %v911
        %973 = vmatpush.bf16.msra.mxu0 %v909
        %974 = vmatpush.bf16.msra.mxu0 %v907
        %975 = vmatpush.bf16.msra.mxu0 %v905
        %976 = vmatpush.bf16.msra.mxu0 %v903
        %977 = vmatmul.bf16.gmra.mxu0 %v782
        %v978 = vpop.f32.mrf.mxu0
        %v979 = vadd.f32 %v961, %v978
        %v980 = vpop.f32.mrf.mxu0
        %v981 = vadd.f32 %v963, %v980
        %982 = vmatmul.bf16.gmra.mxu0 %v785
        %v983 = vpop.f32.mrf.mxu0
        %v984 = vadd.f32 %v966, %v983
        %v985 = vpop.f32.mrf.mxu0
        %986 = vdwg.mxu0
        %987 = vmatpush.bf16.msra.mxu0 %v902
        %988 = vmatpush.bf16.msra.mxu0 %v900
        %989 = vmatpush.bf16.msra.mxu0 %v898
        %990 = vmatpush.bf16.msra.mxu0 %v896
        %991 = vmatpush.bf16.msra.mxu0 %v894
        %992 = vmatpush.bf16.msra.mxu0 %v892
        %993 = vmatpush.bf16.msra.mxu0 %v890
        %994 = vmatpush.bf16.msra.mxu0 %v888
        %995 = vmatmul.bf16.gmra.mxu0 %v770
        %v996 = vpop.f32.mrf.mxu0
        %v997 = vadd.f32 %v755, %v996
        %v998 = vpop.f32.mrf.mxu0
        %v999 = vadd.f32 %v755, %v998
        %1000 = vmatmul.bf16.gmra.mxu0 %v783
        %v1001 = vpop.f32.mrf.mxu0
        %v1002 = vadd.f32 %v755, %v1001
        %v1003 = vpop.f32.mrf.mxu0
        %1004 = vdwg.mxu0
        %1005 = vmatpush.bf16.msra.mxu0 %v918
        %1006 = vmatpush.bf16.msra.mxu0 %v916
        %1007 = vmatpush.bf16.msra.mxu0 %v914
        %1008 = vmatpush.bf16.msra.mxu0 %v912
        %1009 = vmatpush.bf16.msra.mxu0 %v910
        %1010 = vmatpush.bf16.msra.mxu0 %v908
        %1011 = vmatpush.bf16.msra.mxu0 %v906
        %1012 = vmatpush.bf16.msra.mxu0 %v904
        %1013 = vmatmul.bf16.gmra.mxu0 %v782
        %v1014 = vpop.f32.mrf.mxu0
        %v1015 = vadd.f32 %v997, %v1014
        %v1016 = vpop.f32.mrf.mxu0
        %v1017 = vadd.f32 %v999, %v1016
        %1018 = vmatmul.bf16.gmra.mxu0 %v785
        %v1019 = vpop.f32.mrf.mxu0
        %v1020 = vadd.f32 %v1002, %v1019
        %v1021 = vpop.f32.mrf.mxu0
        %1022 = vdwg.mxu0
        %1023 = vst [vmem:[%s214] sm:$0xff] %v979
        %1024 = vst [vmem:[%s214 + $0x8] sm:$0xff] %v1015
        %1025 = vst [vmem:[%s214 + $0x10] sm:$0xff] %v981
        %1026 = vst [vmem:[%s214 + $0x18] sm:$0xff] %v1017
        %1027 = vst [vmem:[%s214 + $0x20] sm:$0x1] %v984
        %1028 = vst [vmem:[%s214 + $0x28] sm:$0x1] %v1020
        %p1029 = scmp.lt.s32.totalorder %s16, 1
        %s1030 = scalar_select %p1029, %s16, 1
        %s1031 = smul.addr %s1030, 6
        %s1032 = smul.addr %s1031, 8
        %s1033 = scalar_lea.vmem %s4, %s1032
        // Predicated region
        $region41: #{tpu_custom_call.1} parent=35 // pred_check
          %p1034 = pneg %p123
        $region42: #{tpu_custom_call.1} parent=35 // pred_check_branch
          %1036 = sbr.rel (%p1034) target = $region44
        $region43: #{tpu_custom_call.1} parent=35 // pred_region
          _
        $region44: #{tpu_custom_call.1} parent=35 // pred_fallthru
          _
      $region36: #{tpu_custom_call.1} parent=5 // pred_fallthru
        _
      %p1037 = scmp.le.s32.totalorder 2, %s11
      // Predicated region
      $region45: #{tpu_custom_call.1} parent=5 // pred_check
        %p1038 = pneg %p1037
      $region46: #{tpu_custom_call.1} parent=5 // pred_check_branch
        %1040 = sbr.rel (%p1038) target = $region48
      $region47: #{tpu_custom_call.1} parent=5 // pred_region
        %s1041 = ssub.s32 %s11, 2
        // Predicated region
        $region49: #{tpu_custom_call.1} parent=47 // pred_check
          %p1042 = pneg %p129
        $region50: #{tpu_custom_call.1} parent=47 // pred_check_branch
          %1044 = sbr.rel (%p1042) target = $region52
        $region51: #{tpu_custom_call.1} parent=47 // pred_region
          %p1045 = scmp.lt.s32.totalorder %s17, 1
          %s1046 = scalar_select %p1045, %s17, 1
          %s1047 = smul.addr %s1046, 6
          %s1048 = smul.addr %s1047, 8
          %s1049 = scalar_lea.vmem %s4, %s1048
        $region52: #{tpu_custom_call.1} parent=47 // pred_fallthru
          _
      $region48: #{tpu_custom_call.1} parent=5 // pred_fallthru
        _
    $region6: #{tpu_custom_call.1} parent=1 // loop_footer
      %s15 = sadd.s32 1, %s11
    $region7: #{tpu_custom_call.1} parent=1 // loop_footer_branch
      %10 = sbr.rel target = $region3
    $region8: #{tpu_custom_call.1} parent=1 // loop_exit
      _
    %1050 = vsyncpa [#allocation3], 1
    %s1051 = scalar_lea.sflag [#allocation3], 1
    %1052 = vsyncpa %s1051, 1

</llo_original>
